<compile_context>
chip_gen: v7x
topology: tpu7x:2x2x1
jax: 0.10.0
libtpu: 0.0.40
codegen_flags: <defaults>
</compile_context>

<pallas_src>
import numpy as np
import jax
import jax.numpy as jnp
from jax import lax
from jax.experimental import pallas as pl
from jax.experimental.pallas import tpu as pltpu


def _round_up(x: int, m: int) -> int:
    return ((x + m - 1) // m) * m


def _onehot_rows_kernel(tgt_ref, out_ref):
    # tgt_ref : VMEM (rt, 1)   int32   target column per row (-1 => zero row)
    # out_ref : VMEM (rt, vn)  out_dtype
    rt, vn = out_ref.shape
    base = pl.program_id(1) * vn                              # global vocab offset of this tile
    col = lax.broadcasted_iota(jnp.int32, (rt, vn), 1) + base
    out_ref[...] = (col == tgt_ref[...]).astype(out_ref.dtype)


def _choose_tiles(R: int, Vp: int, itemsize: int):
    """Pick (row_tile, vocab_tile) for a (R, Vp) one-hot output."""
    # Vocab tile: a multiple-of-128 divisor of Vp, capped at 2048 lanes so the
    # block stays VMEM-friendly even with large row tiles.
    vn = 128
    for cand in (2048, 1024, 512, 256, 128):
        if Vp % cand == 0:
            vn = cand
            break
    # Row tile: target ~2 MiB per output block; double-buffered output is then
    # ~4 MiB, comfortably inside v5e's 16 MiB / v6e-v7x's 32 MiB scoped VMEM.
    target_bytes = 2 * 1024 * 1024
    rt = _round_up(max(target_bytes // (vn * itemsize), 8), 8)
    rt = min(rt, _round_up(R, 8))
    # Keep several balanced grid steps so v7x's two TensorCores both get work.
    while rt > 8 and pl.cdiv(R, rt) * (Vp // vn) < 8:
        rt = _round_up(max(rt // 2, 8), 8)
    # Prefer an rt that divides R exactly -> no row padding, no post-kernel crop.
    if R % 8 == 0:
        while rt > 8 and R % rt != 0:
            rt -= 8
    return rt, vn


def text_onehot_encode(row_targets, vocab_length, *, out_dtype=jnp.float32):
    """row_targets: (B, doc_length) int32 (-1 => zero row).
    Returns (B, doc_length, vocab_length) `out_dtype` one-hot rows."""
    B, L = row_targets.shape
    V = int(vocab_length)
    Vp = _round_up(max(V, 1), 128)                 # lane-dense output (unmasked vst)
    R = B * L
    itemsize = jnp.dtype(out_dtype).itemsize
    rt, vn = _choose_tiles(R, Vp, itemsize)
    Rp = _round_up(R, rt)

    tgt = jnp.reshape(row_targets.astype(jnp.int32), (R, 1))
    if Rp != R:
        tgt = jnp.concatenate(
            [tgt, jnp.full((Rp - R, 1), -1, dtype=jnp.int32)], axis=0)

    grid = (Rp // rt, Vp // vn)
    out = pl.pallas_call(
        _onehot_rows_kernel,
        out_shape=jax.ShapeDtypeStruct((Rp, Vp), out_dtype),
        grid=grid,
        in_specs=[pl.BlockSpec((rt, 1), lambda i, j: (i, 0))],
        out_specs=pl.BlockSpec((rt, vn), lambda i, j: (i, j)),
        compiler_params=pltpu.CompilerParams(
            # every block is written exactly once -> both axes are parallel
            dimension_semantics=("parallel", "parallel"),
        ),
        cost_estimate=pl.CostEstimate(
            flops=Rp * Vp,                              # one compare per element
            transcendentals=0,
            bytes_accessed=Rp * 4 * (Vp // vn) + Rp * Vp * itemsize,
        ),
    )(tgt)

    # Only crop when padding was actually applied (the slice is an extra
    # HBM->HBM copy on a bandwidth-bound op, so skip it whenever possible).
    if Rp != R:
        out = out[:R]
    if Vp != V:
        out = out[:, :V]
    return out.reshape(B, L, V)


def caption_to_row_targets(caption, vocab_lookup, doc_length):
    """Host-side glue mirroring TextEncoderTransformInterface.forward up to the
    one-hot scatter: returns (doc_length,) int32, -1 meaning 'row stays zero'."""
    # TODO(synk): string lowercase/strip/split and vocabulary lookup have no
    # Pallas equivalent; done in plain Python, the kernel consumes indices.
    caption = caption.lower().strip()
    char_list = list(caption)                       # concrete char-level split()
    if len(char_list) > doc_length:
        char_list = char_list[:doc_length]
    index_list = [vocab_lookup.get(item, 0) for item in char_list]
    targets = np.full((doc_length,), -1, dtype=np.int32)
    for idx, item_idx in enumerate(index_list[1:]):
        targets[idx] = item_idx
    return targets


def text_encoder_forward(captions, vocabulary, doc_length, *, out_dtype=jnp.float32):
    """Batched equivalent of the module: list[str] -> (B, doc_length, vocab_length)."""
    vocab_lookup = {item: i for i, item in enumerate(vocabulary)}  # O(1) lookup
    targets = np.stack(
        [caption_to_row_targets(c, vocab_lookup, doc_length) for c in captions])
    return text_onehot_encode(jnp.asarray(targets), len(vocabulary),
                              out_dtype=out_dtype)


def reference_forward(caption, vocabulary, doc_length):
    """NumPy transcription of the PyTorch forward() for verification."""
    caption = caption.lower().strip()
    char_list = list(caption)
    if len(char_list) > doc_length:
        char_list = char_list[:doc_length]

    def embed_index(item):
        try:
            return vocabulary.index(item)
        except ValueError:
            return 0

    index_list = [embed_index(item) for item in char_list]
    emb = np.zeros((doc_length, len(vocabulary)), dtype=np.float32)
    for idx, item_idx in enumerate(index_list[1:]):
        emb[idx, item_idx] = 1.0
    return emb


if __name__ == "__main__":
    doc_length = 16
    vocabulary = [chr(i) for i in range(128)]       # ASCII vocab -> vocab_length = 128

    # Deterministic example captions built from jax.random.PRNGKey(0):
    # random printable-ASCII tails plus fixed prefixes so lower()/strip(),
    # truncation and the trailing zero row are all exercised.
    key = jax.random.PRNGKey(0)
    rand_codes = np.asarray(
        jax.random.randint(key, (2, 20), 32, 127, dtype=jnp.int32))
    captions = [
        "  A Cat " + "".join(chr(c) for c in rand_codes[0]),
        "dog " + "".join(chr(c) for c in rand_codes[1]),
    ]

    out = text_encoder_forward(captions, vocabulary, doc_length)
    out = jax.block_until_ready(out)

    ref = np.stack(
        [reference_forward(c, vocabulary, doc_length) for c in captions])
    assert out.shape == (len(captions), doc_length, len(vocabulary))
    assert np.array_equal(np.asarray(out), ref), "mismatch vs PyTorch-equivalent reference"

    print("KERNEL_OK")
</pallas_src>

<mosaic_0001>
module attributes {stable_mosaic.version = 11 : i64} {
  func.func @_onehot_rows_kernel(%arg0: i32, %arg1: i32, %arg2: memref<8x1xi32, #tpu.memory_space<vmem>>, %arg3: memref<8x128xf32, #tpu.memory_space<vmem>>) attributes {dimension_semantics = [#tpu.dimension_semantics<parallel>, #tpu.dimension_semantics<parallel>], iteration_bounds = array<i64: 4, 1>, scalar_prefetch = 0 : i64, scratch_operands = 0 : i64, tpu.core_type = #tpu.core_type<tc>, window_params = [{transform_indices = @transform_0, window_bounds = array<i64: 8, 1>}, {transform_indices = @transform_1, window_bounds = array<i64: 8, 128>}]} {
    %c128_i32 = arith.constant 128 : i32
    %0 = arith.muli %arg1, %c128_i32 : i32
    %1 = tpu.iota {dimensions = array<i32: 1>} : vector<8x128xi32>
    %2 = vector.broadcast %0 : i32 to vector<8x128xi32>
    %3 = arith.addi %1, %2 : vector<8x128xi32>
    %c0 = arith.constant 0 : index
    %c0_0 = arith.constant 0 : index
    %4 = vector.load %arg2[%c0, %c0_0] : memref<8x1xi32, #tpu.memory_space<vmem>>, vector<8x1xi32>
    %5 = vector.broadcast %4 : vector<8x1xi32> to vector<8x128xi32>
    %6 = arith.cmpi eq, %3, %5 : vector<8x128xi32>
    %7 = arith.extui %6 : vector<8x128xi1> to vector<8x128xi32>
    %8 = arith.sitofp %7 : vector<8x128xi32> to vector<8x128xf32>
    %c0_1 = arith.constant 0 : index
    %c0_2 = arith.constant 0 : index
    %9 = vector.load %arg3[%c0_1, %c0_2] : memref<8x128xf32, #tpu.memory_space<vmem>>, vector<8x128xf32>
    tpu.vector_store %arg3[%c0_1, %c0_2], %8 {strides = array<i32>} : memref<8x128xf32, #tpu.memory_space<vmem>>, vector<8x128xf32>,
    return
  }
  func.func @transform_0(%arg0: i32, %arg1: i32) -> (i32, i32) {
    %c0_i32 = arith.constant 0 : i32
    %c0_i32_0 = arith.constant 0 : i32
    return %arg0, %c0_i32 : i32, i32
  }
  func.func @transform_1(%arg0: i32, %arg1: i32) -> (i32, i32) {
    %c0_i32 = arith.constant 0 : i32
    return %arg0, %arg1 : i32, i32
  }
}

</mosaic_0001>

<llo_original>
// kernel: tpu_custom_call.1
$region0: #{tpu_custom_call.1}
  #allocation0 [shape = 'u32[]', space=smem, size = 0x4, offset = 0x4, fixed_abs, tag = 'smem constant byte address 0x4 - core index']
  #allocation1 [shape = 'u32[144,128]{1,0:T(1,128)}', space=vmem, size = 0x12000, scoped, tag = 'internal scratch']
  %s0 = inlined_call_operand.vmem [shape: s32[32,1], index: 0, kind: input, shape index: {}]
  %s1 = inlined_call_operand.hbm [shape: f32[32,128], index: 1, kind: output, shape index: {}]
  %s2 = sld [smem:[#allocation0]]
  $region37: #{tpu_custom_call.1} parent=0
    _
  %s4 = ssub.s32 1, %s2
  %s5 = scalar_select 0, %s4, %s2
  $region1: #{tpu_custom_call.1} parent=0
    #allocation2 [shape = 'u8[8192]{0}', space=vmem, size = 0x2000, scoped, tag = 'output window, operand 0']
    #allocation3 [shape = 's32[2]{0}', space=sflag, size = 0x8, scoped, tag = 'scoped memory for tpu_custom_call.1']
    %6 = vsyncpa [#allocation3], 0
    %s7 = scalar_lea.sflag [#allocation3], 1
    %8 = vsyncpa %s7, 0
    loop: start=0, step=1, limit=6
    $region2: #{tpu_custom_call.1} parent=1 // loop_pre_header
      _
    $region3: #{tpu_custom_call.1} parent=1 // loop_header
      %s10 = sphi 0, %s14
      %p11 = scmp.ge.s32.totalorder %s10, 6
      %s17 = sphi 0, %s29
      %s18 = sphi 0, %s25
      %s19 = sphi 0, %s17
      %s20 = sphi 0, %s18
      %s21 = sphi 0, %s19
      %s22 = sphi 0, %s20
      %s32 = sphi 0, %s34
      %s35 = sphi 0, %s32
      %s36 = sphi 0, %s35
      %s52 = sphi 0, %s36
      %s60 = sphi 0, %s62
      %s63 = sphi 0, %s60
      %s64 = sphi 0, %s63
      %s80 = sphi 0, %s64
    $region4: #{tpu_custom_call.1} parent=1 // loop_header_branch
      %13 = sbr.rel (%p11) target = $region8
    $region5: #{tpu_custom_call.1} parent=1 // loop_body
      %s15 = ssub.s32 %s10, 1
      %s16 = ssub.s32 %s10, 2
      %s23 = sadd.s32 1, %s18
      %p24 = scmp.ge.s32.totalorder %s23, 1
      %s25 = scalar_select %p24, 0, %s23
      %s26 = sadd.s32 1, %s17
      %s27 = scalar_select %p24, %s26, %s17
      %p28 = scmp.ge.s32.totalorder %s27, 4
      %s29 = scalar_select %p28, 0, %s27
      %s30 = ssub.s32 %s17, %s29
      %p31 = scmp.eq.s32.totalorder %s30, 0
      %s33 = sadd.s32 %s32, 1
      %s34 = scalar_select %p31, %s32, %s33
      %p37 = pneg %p31
      %p38 = scmp.eq.s32.totalorder %s10, 3
      %p39 = por %p37, %p38
      %p40 = scmp.ne.s32.totalorder %s32, %s35
      %p41 = scmp.eq.s32.totalorder %s10, 0
      %p42 = por %p40, %p41
      %p43 = scmp.ne.s32.totalorder %s32, %s35
      %p44 = scmp.eq.s32.totalorder %s15, 3
      %p45 = por %p43, %p44
      %p46 = scmp.ne.s32.totalorder %s35, %s36
      %p47 = scmp.eq.s32.totalorder %s15, 0
      %p48 = por %p46, %p47
      %p49 = scmp.ne.s32.totalorder %s35, %s36
      %p50 = scmp.eq.s32.totalorder %s16, 3
      %p51 = por %p49, %p50
      %p53 = scmp.ne.s32.totalorder %s36, %s52
      %p54 = scmp.eq.s32.totalorder %s16, 0
      %p55 = por %p53, %p54
      %s56 = ssub.s32 %s17, %s29
      %s57 = ssub.s32 %s18, %s25
      %s58 = sor.u32 %s56, %s57
      %p59 = scmp.eq.s32.totalorder %s58, 0
      %s61 = sadd.s32 %s60, 1
      %s62 = scalar_select %p59, %s60, %s61
      %p65 = pneg %p59
      %p66 = scmp.eq.s32.totalorder %s10, 3
      %p67 = por %p65, %p66
      %p68 = scmp.ne.s32.totalorder %s60, %s63
      %p69 = scmp.eq.s32.totalorder %s10, 0
      %p70 = por %p68, %p69
      %p71 = scmp.ne.s32.totalorder %s60, %s63
      %p72 = scmp.eq.s32.totalorder %s15, 3
      %p73 = por %p71, %p72
      %p74 = scmp.ne.s32.totalorder %s63, %s64
      %p75 = scmp.eq.s32.totalorder %s15, 0
      %p76 = por %p74, %p75
      %p77 = scmp.ne.s32.totalorder %s63, %s64
      %p78 = scmp.eq.s32.totalorder %s16, 3
      %p79 = por %p77, %p78
      %p81 = scmp.ne.s32.totalorder %s64, %s80
      %p82 = scmp.eq.s32.totalorder %s16, 0
      %p83 = por %p81, %p82
      %p84 = scmp.le.s32.totalorder 1, %s10
      %p85 = scmp.lt.s32.totalorder %s10, 5
      %p86 = pnand %p84, %p85
      %p87 = pneg %p86
      // Predicated region
      $region9: #{tpu_custom_call.1} parent=5 // pred_check
        _
      $region10: #{tpu_custom_call.1} parent=5 // pred_check_branch
        %89 = sbr.rel (%p86) target = $region12
      $region11: #{tpu_custom_call.1} parent=5 // pred_region
        %s90 = ssub.s32 %s10, 1
      $region12: #{tpu_custom_call.1} parent=5 // pred_fallthru
        _
      %p91 = scmp.lt.s32.totalorder %s10, 4
      // Predicated region
      $region13: #{tpu_custom_call.1} parent=5 // pred_check
        %p92 = pneg %p91
      $region14: #{tpu_custom_call.1} parent=5 // pred_check_branch
        %94 = sbr.rel (%p92) target = $region16
      $region15: #{tpu_custom_call.1} parent=5 // pred_region
        // Predicated region
        $region17: #{tpu_custom_call.1} parent=15 // pred_check
          %p95 = pneg %p42
        $region18: #{tpu_custom_call.1} parent=15 // pred_check_branch
          %97 = sbr.rel (%p95) target = $region20
        $region19: #{tpu_custom_call.1} parent=15 // pred_region
          %p98 = scmp.lt.s32.totalorder %s17, 3
          %s99 = scalar_select %p98, %s17, 3
          %s100 = smul.addr %s99, 8
          %s101 = scalar_lea.vmem %s0, %s100
        $region20: #{tpu_custom_call.1} parent=15 // pred_fallthru
          _
      $region16: #{tpu_custom_call.1} parent=5 // pred_fallthru
        _
      %p102 = scmp.le.s32.totalorder 1, %s10
      %p103 = scmp.lt.s32.totalorder %s10, 5
      %p104 = pnand %p102, %p103
      %p105 = pneg %p104
      // Predicated region
      $region21: #{tpu_custom_call.1} parent=5 // pred_check
        _
      $region22: #{tpu_custom_call.1} parent=5 // pred_check_branch
        %107 = sbr.rel (%p104) target = $region24
      $region23: #{tpu_custom_call.1} parent=5 // pred_region
        %s108 = ssub.s32 %s10, 1
        %p109 = scmp.lt.s32.totalorder %s19, 3
        %s110 = scalar_select %p109, %s19, 3
        %s111 = smul.addr %s110, 8
        %s112 = scalar_lea.vmem %s0, %s111
        %p113 = pneg %p48
        %p114 = pneg %p45
        %p115 = pneg %p76
        %p116 = pneg %p73
        %s117 = sand.u32 %s63, 1
        %s118 = scalar_lea.sflag [#allocation3], %s117
        %s119 = sand.u32 %s63, 1
        %s120 = smul.addr %s119, 8
        %s121 = scalar_lea.vmem [#allocation2], %s120
        %p122 = scmp.lt.s32.totalorder %s19, 3
        %s123 = scalar_select %p122, %s19, 3
        %s124 = smul.addr %s123, 8
        %s125 = scalar_lea.vmem %s0, %s124
        %s126 = smul.u32 %s20, 128
        %v127 = vlaneseq
        %v128 = vand.u32 %v127, 127
        %v129 = vstv %s126
        %v130 = vadd.s32 %v128, %v129
        %v131 = vld [vmem:[%s125] sm:$0xff]
        %132 = vset.pattern.permute.xlu0 0
        %133 = vperm.xlu0 %132, %v131
        %v134 = vpop.permute.xlu0 %133
        %vm135 = vcmp.eq.s32.totalorder %v130, %v134
        %v136 = vsel %vm135, 1, 0
        %v137 = vcvt.s32.f32 %v136
        %138 = vst [vmem:[%s121] sm:$0xff] %v137
        %s139 = sand.u32 %s63, 1
        %s140 = scalar_lea.sflag [#allocation3], %s139
        %s141 = sand.u32 %s63, 1
        %s142 = smul.addr %s141, 8
        %s143 = scalar_lea.vmem [#allocation2], %s142
        // Predicated region
        $region25: #{tpu_custom_call.1} parent=23 // pred_check
          %p144 = pneg %p73
        $region26: #{tpu_custom_call.1} parent=23 // pred_check_branch
          %146 = sbr.rel (%p144) target = $region28
        $region27: #{tpu_custom_call.1} parent=23 // pred_region
          %s148 = ssub.s32 128, 128
          %149 = vsyncadd %s140, %s148
          %s150 = sadd.s32 %s20, %s19
          %s151 = smul.addr %s150, 128
          %s152 = scalar_lea.hbm %s1, %s151
          %s154 = sshll.u32 %s143, 4
          %s155 = int_to_ptr.vmem [resolvable:$true] %s154
          %157 = dma.vmem_to_hbm [thread:$0]  %s155, 128, %s152, %s140
        $region28: #{tpu_custom_call.1} parent=23 // pred_fallthru
          _
      $region24: #{tpu_custom_call.1} parent=5 // pred_fallthru
        _
      %p158 = scmp.le.s32.totalorder 2, %s10
      // Predicated region
      $region29: #{tpu_custom_call.1} parent=5 // pred_check
        %p159 = pneg %p158
      $region30: #{tpu_custom_call.1} parent=5 // pred_check_branch
        %161 = sbr.rel (%p159) target = $region32
      $region31: #{tpu_custom_call.1} parent=5 // pred_region
        %s162 = ssub.s32 %s10, 2
        // Predicated region
        $region33: #{tpu_custom_call.1} parent=31 // pred_check
          %p163 = pneg %p79
        $region34: #{tpu_custom_call.1} parent=31 // pred_check_branch
          %165 = sbr.rel (%p163) target = $region36
        $region35: #{tpu_custom_call.1} parent=31 // pred_region
          %s166 = sand.u32 %s64, 1
          %s167 = scalar_lea.sflag [#allocation3], %s166
          %s168 = sand.u32 %s64, 1
          %s169 = smul.addr %s168, 8
          %s170 = scalar_lea.vmem [#allocation2], %s169
          %171 = dma.done %s167, 128
        $region36: #{tpu_custom_call.1} parent=31 // pred_fallthru
          _
      $region32: #{tpu_custom_call.1} parent=5 // pred_fallthru
        _
    $region6: #{tpu_custom_call.1} parent=1 // loop_footer
      %s14 = sadd.s32 1, %s10
    $region7: #{tpu_custom_call.1} parent=1 // loop_footer_branch
      %9 = sbr.rel target = $region3
    $region8: #{tpu_custom_call.1} parent=1 // loop_exit
      _
    %172 = vsyncpa [#allocation3], 1
    %s173 = scalar_lea.sflag [#allocation3], 1
    %174 = vsyncpa %s173, 1

</llo_original>
